<compile_context>
chip_gen: v5e
topology: v5e:2x2
jax: 0.10.0
libtpu: 0.0.40
codegen_flags: <defaults>
</compile_context>

<pallas_src>
import jax
import jax.numpy as jnp
from jax.experimental import pallas as pl
from jax.experimental.pallas import tpu as pltpu

B = 2            # batch
S = 8            # sequence length
H = 32           # hidden_size
NUM_CLASSES = 2
LANE = 128       # pad the logits dim to full lane width for an unmasked store


# ------------------------------ kernel -------------------------------------
def classification_head_kernel(cls_ref, wd_ref, bd_ref, wp_ref, bp_ref, o_ref):
    # cls_ref: (B, H)     CLS-token hidden states (pre-sliced; no (B,S,H) DMA)
    # wd_ref:  (H, H)     dense weight        bd_ref: (1, H)    dense bias
    # wp_ref:  (H, LANE)  out_proj weight, zero-padded past NUM_CLASSES
    # bp_ref:  (1, LANE)  out_proj bias,   zero-padded past NUM_CLASSES
    # o_ref:   (B, LANE)  lane-dense padded logits
    x = cls_ref[...]
    # dropout: identity in eval mode
    x = jnp.tanh(
        jnp.dot(x, wd_ref[...], preferred_element_type=jnp.float32)
        + bd_ref[...])
    # dropout: identity in eval mode
    o_ref[...] = (
        jnp.dot(x, wp_ref[...], preferred_element_type=jnp.float32)
        + bp_ref[...])


# ------------------------- one-time param prep ------------------------------
def prepare_head_params(dense_w, dense_b, out_w, out_b):
    """One-time layout plumbing, done at parameter-load time (not per call)."""
    n_pad = LANE - out_w.shape[1]
    wp_pad = jnp.pad(out_w, ((0, 0), (0, n_pad)))                 # (H, LANE)
    bp_pad = jnp.pad(out_b.reshape(1, -1), ((0, 0), (0, n_pad)))  # (1, LANE)
    bd2 = dense_b.reshape(1, -1)                                  # (1, H)
    return dense_w, bd2, wp_pad, bp_pad


# ------------------------------ wrapper -------------------------------------
@jax.jit
def roberta_classification_head(features, dense_w, bd2, wp_pad, bp_pad):
    """features: (B, S, H) f32 -> logits (B, NUM_CLASSES) f32."""
    b = features.shape[0]
    # Slice the CLS token here (fused under jit): only (B, H) reaches the
    # kernel, so the (B, S, H) tensor is never copied into VMEM.
    cls = features[:, 0, :]

    vmem = pl.BlockSpec(memory_space=pltpu.MemorySpace.VMEM)
    logits_pad = pl.pallas_call(
        classification_head_kernel,
        out_shape=jax.ShapeDtypeStruct((b, LANE), jnp.float32),
        in_specs=[vmem] * 5,
        out_specs=vmem,
    )(cls, dense_w, bd2, wp_pad, bp_pad)

    # Zero-padded lanes carry exact zeros; slicing recovers the true logits.
    return logits_pad[:, :NUM_CLASSES]


# -------------------------------- main --------------------------------------
if __name__ == "__main__":
    key = jax.random.PRNGKey(0)
    kf, kwd, kbd, kwp, kbp = jax.random.split(key, 5)

    # features plays the role of the encoder output [batch, seq, hidden]
    features = jax.random.normal(kf, (B, S, H), dtype=jnp.float32)
    dense_w = 0.02 * jax.random.normal(kwd, (H, H), dtype=jnp.float32)
    dense_b = 0.02 * jax.random.normal(kbd, (H,), dtype=jnp.float32)
    out_w = 0.02 * jax.random.normal(kwp, (H, NUM_CLASSES), dtype=jnp.float32)
    out_b = 0.02 * jax.random.normal(kbp, (NUM_CLASSES,), dtype=jnp.float32)

    # One-time parameter preparation (hoisted out of the per-call hot path).
    params = prepare_head_params(dense_w, dense_b, out_w, out_b)

    logits = jax.block_until_ready(
        roberta_classification_head(features, *params))

    # pure-JAX reference (same math as the PyTorch module in eval mode)
    ref = jnp.tanh(features[:, 0, :] @ dense_w + dense_b) @ out_w + out_b

    assert logits.shape == (B, NUM_CLASSES)
    assert bool(jnp.all(jnp.isfinite(logits)))
    assert bool(jnp.max(jnp.abs(logits - ref)) < 1e-5)
    print("KERNEL_OK")
</pallas_src>

<mosaic_0001>
module attributes {stable_mosaic.version = 11 : i64} {
  func.func @classification_head_kernel(%arg0: memref<2x32xf32, #tpu.memory_space<vmem>>, %arg1: memref<32x32xf32, #tpu.memory_space<vmem>>, %arg2: memref<1x32xf32, #tpu.memory_space<vmem>>, %arg3: memref<32x128xf32, #tpu.memory_space<vmem>>, %arg4: memref<1x128xf32, #tpu.memory_space<vmem>>, %arg5: memref<2x128xf32, #tpu.memory_space<vmem>>) attributes {dimension_semantics = [], scalar_prefetch = 0 : i64, scratch_operands = 0 : i64, tpu.core_type = #tpu.core_type<tc>} {
    %c0 = arith.constant 0 : index
    %c0_0 = arith.constant 0 : index
    %0 = vector.load %arg0[%c0, %c0_0] : memref<2x32xf32, #tpu.memory_space<vmem>>, vector<2x32xf32>
    %c0_1 = arith.constant 0 : index
    %c0_2 = arith.constant 0 : index
    %1 = vector.load %arg1[%c0_1, %c0_2] : memref<32x32xf32, #tpu.memory_space<vmem>>, vector<32x32xf32>
    %cst = arith.constant dense<0.000000e+00> : vector<2x32xf32>
    %2 = tpu.matmul %0, %1, %cst {dimension_numbers = #tpu.dot_dimension_numbers<[1], [0], [0], [1], [0, 0, 1, 1], [], []>} : vector<2x32xf32>, vector<32x32xf32>, vector<2x32xf32> -> vector<2x32xf32>
    %c0_3 = arith.constant 0 : index
    %c0_4 = arith.constant 0 : index
    %3 = vector.load %arg2[%c0_3, %c0_4] : memref<1x32xf32, #tpu.memory_space<vmem>>, vector<1x32xf32>
    %4 = vector.broadcast %3 : vector<1x32xf32> to vector<2x32xf32>
    %5 = arith.addf %2, %4 : vector<2x32xf32>
    %6 = math.tanh %5 : vector<2x32xf32>
    %c0_5 = arith.constant 0 : index
    %c0_6 = arith.constant 0 : index
    %7 = vector.load %arg3[%c0_5, %c0_6] : memref<32x128xf32, #tpu.memory_space<vmem>>, vector<32x128xf32>
    %cst_7 = arith.constant dense<0.000000e+00> : vector<2x128xf32>
    %8 = tpu.matmul %6, %7, %cst_7 {dimension_numbers = #tpu.dot_dimension_numbers<[1], [0], [0], [1], [0, 0, 1, 1], [], []>} : vector<2x32xf32>, vector<32x128xf32>, vector<2x128xf32> -> vector<2x128xf32>
    %c0_8 = arith.constant 0 : index
    %c0_9 = arith.constant 0 : index
    %9 = vector.load %arg4[%c0_8, %c0_9] : memref<1x128xf32, #tpu.memory_space<vmem>>, vector<1x128xf32>
    %10 = vector.broadcast %9 : vector<1x128xf32> to vector<2x128xf32>
    %11 = arith.addf %8, %10 : vector<2x128xf32>
    %c0_10 = arith.constant 0 : index
    %c0_11 = arith.constant 0 : index
    %12 = vector.load %arg5[%c0_10, %c0_11] : memref<2x128xf32, #tpu.memory_space<vmem>>, vector<2x128xf32>
    tpu.vector_store %arg5[%c0_10, %c0_11], %11 {strides = array<i32>} : memref<2x128xf32, #tpu.memory_space<vmem>>, vector<2x128xf32>,
    return
  }
}

</mosaic_0001>

<llo_original>
// kernel: roberta_classification_head.1
$region0: #{roberta_classification_head.1}
  #allocation0 [shape = 'u32[]', space=smem, size = 0x4, offset = 0x4, fixed_abs, tag = 'smem constant byte address 0x4 - core index']
  #allocation1 [shape = 'u32[72,128]{1,0:T(1,128)}', space=vmem, size = 0x9000, scoped, tag = 'internal scratch']
  %s0 = inlined_call_operand.vmem [shape: f32[2,32], index: 0, kind: input, shape index: {}]
  %s1 = inlined_call_operand.hbm [shape: f32[32,32], index: 1, kind: input, shape index: {}]
  %s2 = inlined_call_operand.vmem [shape: f32[1,32], index: 2, kind: input, shape index: {}]
  %s3 = inlined_call_operand.hbm [shape: f32[32,128], index: 3, kind: input, shape index: {}]
  %s4 = inlined_call_operand.vmem [shape: f32[1,128], index: 4, kind: input, shape index: {}]
  %s5 = inlined_call_operand.hbm [shape: f32[2,128], index: 5, kind: output, shape index: {}]
  %s6 = sld [smem:[#allocation0]]
  $region38: #{roberta_classification_head.1} parent=0
    _
  %s8 = ssub.s32 1, %s6
  %s9 = scalar_select 0, %s8, %s6
  $region1: #{roberta_classification_head.1} parent=0
    #allocation2 [shape = 'u8[16384]{0}', space=vmem, size = 0x4000, scoped, tag = 'input window, operand 1, single buffered']
    #allocation3 [shape = 's32[1]{0}', space=sflag, size = 0x4, scoped, tag = 'scoped memory for roberta_classification_head.1']
    #allocation4 [shape = 's32[1]{0}', space=sflag, size = 0x4, scoped, tag = 'scoped memory for roberta_classification_head.1']
    #allocation5 [shape = 'u8[16384]{0}', space=vmem, size = 0x4000, scoped, tag = 'input window, operand 3, single buffered']
    #allocation6 [shape = 's32[1]{0}', space=sflag, size = 0x4, scoped, tag = 'scoped memory for roberta_classification_head.1']
    #allocation7 [shape = 'u8[1024]{0}', space=vmem, size = 0x400, scoped, tag = 'output window, operand 0, single buffered']
    %10 = vsyncpa [#allocation3], 0
    %11 = vsyncpa [#allocation6], 0
    %12 = vsyncpa [#allocation4], 0
    // Predicated region
    $region2: #{roberta_classification_head.1} parent=1 // pred_check
      _
    $region3: #{roberta_classification_head.1} parent=1 // pred_check_branch
      %14 = sbr.rel (0) target = $region5
    $region4: #{roberta_classification_head.1} parent=1 // pred_region
      _
    $region5: #{roberta_classification_head.1} parent=1 // pred_fallthru
      _
    // Predicated region
    $region6: #{roberta_classification_head.1} parent=1 // pred_check
      _
    $region7: #{roberta_classification_head.1} parent=1 // pred_check_branch
      %16 = sbr.rel (0) target = $region9
    $region8: #{roberta_classification_head.1} parent=1 // pred_region
      %18 = vsyncadd [#allocation3], 0
      %s19 = sshll.u32 %s1, 4
      %s20 = int_to_ptr.hbm [resolvable:$true] %s19
      %s21 = sshll.u32 [#allocation2], 4
      %s22 = int_to_ptr.vmem [resolvable:$true] %s21
      %27 = dma.hbm_to_vmem [thread:$0]  %s20, 512, %s22, [#allocation3], 128, 128, 8
    $region9: #{roberta_classification_head.1} parent=1 // pred_fallthru
      _
    // Predicated region
    $region10: #{roberta_classification_head.1} parent=1 // pred_check
      _
    $region11: #{roberta_classification_head.1} parent=1 // pred_check_branch
      %29 = sbr.rel (0) target = $region13
    $region12: #{roberta_classification_head.1} parent=1 // pred_region
      _
    $region13: #{roberta_classification_head.1} parent=1 // pred_fallthru
      _
    // Predicated region
    $region14: #{roberta_classification_head.1} parent=1 // pred_check
      _
    $region15: #{roberta_classification_head.1} parent=1 // pred_check_branch
      %31 = sbr.rel (0) target = $region17
    $region16: #{roberta_classification_head.1} parent=1 // pred_region
      %33 = vsyncadd [#allocation6], 0
      %s34 = sshll.u32 %s3, 4
      %s35 = int_to_ptr.hbm [resolvable:$true] %s34
      %s36 = sshll.u32 [#allocation5], 4
      %s37 = int_to_ptr.vmem [resolvable:$true] %s36
      %42 = dma.hbm_to_vmem [thread:$0]  %s35, 512, %s37, [#allocation6], 128, 128, 8
    $region17: #{roberta_classification_head.1} parent=1 // pred_fallthru
      _
    // Predicated region
    $region18: #{roberta_classification_head.1} parent=1 // pred_check
      _
    $region19: #{roberta_classification_head.1} parent=1 // pred_check_branch
      %44 = sbr.rel (0) target = $region21
    $region20: #{roberta_classification_head.1} parent=1 // pred_region
      _
    $region21: #{roberta_classification_head.1} parent=1 // pred_fallthru
      _
    // Predicated region
    $region22: #{roberta_classification_head.1} parent=1 // pred_check
      _
    $region23: #{roberta_classification_head.1} parent=1 // pred_check_branch
      %46 = sbr.rel (0) target = $region25
    $region24: #{roberta_classification_head.1} parent=1 // pred_region
      %48 = dma.done [#allocation3], 512
    $region25: #{roberta_classification_head.1} parent=1 // pred_fallthru
      _
    // Predicated region
    $region26: #{roberta_classification_head.1} parent=1 // pred_check
      _
    $region27: #{roberta_classification_head.1} parent=1 // pred_check_branch
      %50 = sbr.rel (0) target = $region29
    $region28: #{roberta_classification_head.1} parent=1 // pred_region
      %52 = dma.done [#allocation6], 512
    $region29: #{roberta_classification_head.1} parent=1 // pred_fallthru
      _
    %v53 = vld [vmem:[%s0] sm:$0x3]
    %v54 = vld [vmem:[#allocation2] sm:$0xff]
    %v55 = vld [vmem:[#allocation2 + $0x8] sm:$0xff]
    %v56 = vld [vmem:[#allocation2 + $0x10] sm:$0xff]
    %v57 = vld [vmem:[#allocation2 + $0x18] sm:$0xff]
    %v58 = vld [vmem:[%s2] sm:$0x1]
    %v60 = vperm.slane %v58, 0
    %vm62 = vcmask 261120
    %v64 = vsel %vm62, %v53, 0
    %66 = vmatpush.msra.mxu0 0.0
    %67 = vmatpush.msra.mxu0 0.0
    %68 = vmatpush.msra.mxu0 0.0
    %69 = vmatpush.msra.mxu0 0.0
    %70 = vmatpush.msra.mxu0 0.0
    %71 = vmatpush.msra.mxu0 0.0
    %72 = vmatpush.msra.mxu0 0.0
    %73 = vmatpush.msra.mxu0 0.0
    %74 = vmatpush.msra.mxu0 0.0
    %75 = vmatpush.msra.mxu0 0.0
    %76 = vmatpush.msra.mxu0 0.0
    %77 = vmatpush.msra.mxu0 0.0
    %78 = vmatpush.msra.mxu0 %v57
    %79 = vmatpush.msra.mxu0 %v56
    %80 = vmatpush.msra.mxu0 %v55
    %81 = vmatpush.msra.mxu0 %v54
    %82 = vmatmul.f32.gmra.mxu0 %v64
    %v83 = vpop.f32.mrf.mxu0
    %v84 = vadd.f32 %v60, %v83
    %85 = vdwg.mxu0
    %v86 = vtanh.pop %v84
    %v87 = vld [vmem:[#allocation5] sm:$0xff]
    %v88 = vld [vmem:[#allocation5 + $0x8] sm:$0xff]
    %v89 = vld [vmem:[#allocation5 + $0x10] sm:$0xff]
    %v90 = vld [vmem:[#allocation5 + $0x18] sm:$0xff]
    %v91 = vld [vmem:[%s4] sm:$0x1]
    %v93 = vperm.slane %v91, 0
    %v96 = vsel %vm62, %v86, 0
    %98 = vmatpush.msra.mxu0 0.0
    %99 = vmatpush.msra.mxu0 0.0
    %100 = vmatpush.msra.mxu0 0.0
    %101 = vmatpush.msra.mxu0 0.0
    %102 = vmatpush.msra.mxu0 0.0
    %103 = vmatpush.msra.mxu0 0.0
    %104 = vmatpush.msra.mxu0 0.0
    %105 = vmatpush.msra.mxu0 0.0
    %106 = vmatpush.msra.mxu0 0.0
    %107 = vmatpush.msra.mxu0 0.0
    %108 = vmatpush.msra.mxu0 0.0
    %109 = vmatpush.msra.mxu0 0.0
    %110 = vmatpush.msra.mxu0 %v90
    %111 = vmatpush.msra.mxu0 %v89
    %112 = vmatpush.msra.mxu0 %v88
    %113 = vmatpush.msra.mxu0 %v87
    %114 = vmatmul.f32.gmra.mxu0 %v96
    %v115 = vpop.f32.mrf.mxu0
    %v116 = vadd.f32 %v93, %v115
    %117 = vdwg.mxu0
    %118 = vst [vmem:[#allocation7] sm:$0x3] %v116
    // Predicated region
    $region30: #{roberta_classification_head.1} parent=1 // pred_check
      _
    $region31: #{roberta_classification_head.1} parent=1 // pred_check_branch
      %120 = sbr.rel (0) target = $region33
    $region32: #{roberta_classification_head.1} parent=1 // pred_region
      %122 = vsyncadd [#allocation4], 0
      %s124 = sshll.u32 [#allocation7], 4
      %s125 = int_to_ptr.vmem [resolvable:$true] %s124
      %s126 = sshll.u32 %s5, 4
      %s127 = int_to_ptr.hbm [resolvable:$true] %s126
      %129 = dma.vmem_to_hbm [thread:$0]  %s125, 32, %s127, [#allocation4]
    $region33: #{roberta_classification_head.1} parent=1 // pred_fallthru
      _
    // Predicated region
    $region34: #{roberta_classification_head.1} parent=1 // pred_check
      _
    $region35: #{roberta_classification_head.1} parent=1 // pred_check_branch
      %131 = sbr.rel (0) target = $region37
    $region36: #{roberta_classification_head.1} parent=1 // pred_region
      %133 = dma.done [#allocation4], 32
    $region37: #{roberta_classification_head.1} parent=1 // pred_fallthru
      _
    %134 = vsyncpa [#allocation3], 1
    %135 = vsyncpa [#allocation6], 1
    %136 = vsyncpa [#allocation4], 1

</llo_original>
